<compile_context>
chip_gen: v6e
topology: v6e:2x2x1
jax: 0.10.0
libtpu: 0.0.40
codegen_flags: <defaults>
</compile_context>

<pallas_src>
import functools

import jax
import jax.numpy as jnp
from jax import lax
from jax.experimental import pallas as pl
from jax.experimental.pallas import tpu as pltpu


def _round_up(x, m):
    return ((x + m - 1) // m) * m


def _single_layer_kernel(H, W, HW, matmul_dtype,
                         x_ref, scale_ref, bias_ref, w_ref, out_ref, apad_ref):
    # x_ref:     (NB, C, HWp)       flattened-NCHW input block (HWp = lane-padded H*W)
    # scale_ref: (C, 1)             folded BN scale = gamma/sqrt(var+eps)
    # bias_ref:  (C, 1)             folded BN bias  = beta - mean*scale
    # w_ref:     (9, G, C)          conv taps, tap index t = kh*3 + kw
    # out_ref:   (NB, C+G, HWp)     concatenated output block (NCHW flat)
    # apad_ref:  (C, NB*HWP)        zero-padded activation strip, HWP % W == 0
    NB, C, HWp = x_ref.shape
    G = out_ref.shape[1] - C
    PAD = W + 1
    HWP = apad_ref.shape[1] // NB        # per-image padded strip length
    LW = (NB - 1) * HWP + HWp            # conv-accumulator strip width

    x = x_ref[...]
    scale = scale_ref[...].reshape(1, C, 1)
    bias = bias_ref[...].reshape(1, C, 1)

    # BatchNorm (eval mode, folded) + ReLU in f32.
    a = jnp.maximum(x.astype(jnp.float32) * scale + bias, 0.0)
    if HWp != HW:
        # Zero the lane-padding columns so they cannot leak into the conv
        # through the vertical taps of the last real image row.
        pos = lax.broadcasted_iota(jnp.int32, (1, 1, HWp), 2)
        a = jnp.where(pos < HW, a, 0.0)
    a = a.astype(matmul_dtype)

    # DenseNet concat, part 1: x passes straight through as channels [0, C).
    out_ref[:, 0:C, :] = x.astype(out_ref.dtype)

    # Stage each image of the block into its own zero-padded strip so every
    # 3x3 tap becomes one lane-shifted slice feeding the MXU directly (no
    # im2col buffer).  The pad strips MUST be zeroed: vertically-out-of-image
    # taps read them unmasked -- that *is* the conv's zero padding.
    zlead = jnp.zeros((C, PAD), matmul_dtype)
    ztrail = jnp.zeros((C, HWP - PAD - HWp), matmul_dtype)
    for nb in range(NB):
        base = nb * HWP
        apad_ref[:, base:base + PAD] = zlead
        apad_ref[:, base + PAD + HWp:base + HWP] = ztrail
        apad_ref[:, base + PAD:base + PAD + HWp] = a[nb]

    # Column masks for the horizontally shifted taps (dw = +-1); built once
    # and reused across the three kh values.  Vertical (dw = 0) taps need no
    # mask because out-of-image rows read the zeroed pad lanes.
    # HWP is a multiple of W, so the image column is simply (strip index % W).
    j = lax.broadcasted_iota(jnp.int32, (1, LW), 1)
    wcol = j % W
    left_ok = wcol >= 1            # valid lanes for dw = -1 taps
    right_ok = wcol <= W - 2       # valid lanes for dw = +1 taps

    # 9-tap accumulation: one wide batch-fused MXU matmul per tap,
    # accumulated in f32.  No per-image matmul loop, no patches scratch.
    acc = jnp.zeros((G, LW), jnp.float32)
    for kh in range(3):
        for kw in range(3):
            dh, dw = kh - 1, kw - 1
            start = PAD + dh * W + dw
            tap = apad_ref[:, start:start + LW]          # (C, LW), matmul dtype
            if dw == -1:
                tap = jnp.where(left_ok, tap, 0)
            elif dw == 1:
                tap = jnp.where(right_ok, tap, 0)
            acc += jnp.dot(w_ref[kh * 3 + kw], tap,
                           preferred_element_type=jnp.float32)

    # DenseNet concat, part 2: conv result into channels [C, C+G).
    for nb in range(NB):
        out_ref[nb, C:C + G, :] = (
            acc[:, nb * HWP:nb * HWP + HWp].astype(out_ref.dtype))


def _vmem_capacity_bytes():
    """Per-core VMEM capacity; falls back to the smallest current chip (v7x)."""
    try:
        return int(pltpu.get_tpu_info().vmem_capacity_bytes)
    except Exception:
        return 64 * 1024 * 1024


def _per_image_vmem_bytes(C, G, HWp, HWP, x_isz, out_isz, mm_isz):
    def rows(r, isz):
        sub = {4: 8, 2: 16, 1: 32}.get(isz, 8)
        return _round_up(max(r, 1), sub)
    x_blk = 2 * rows(C, x_isz) * HWp * x_isz              # double-buffered input block
    o_blk = 2 * rows(C + G, out_isz) * HWp * out_isz      # double-buffered output block
    stage = rows(C, mm_isz) * HWP * mm_isz                # activation strip (scratch)
    accum = rows(G, 4) * HWP * 4                          # f32 conv accumulator
    live = 2 * rows(C, 4) * HWp * 4                       # BN / ReLU temporaries
    return x_blk + o_blk + stage + accum + live


def _pick_batch_block(n, per_image_bytes, budget_bytes):
    # Keep >= 4 grid steps when N allows (>= 2 per TensorCore on v7x), else
    # >= 2 steps so the BlockSpec pipeline still has something to prefetch,
    # and never exceed the VMEM budget.
    cap = n // 4 if n >= 4 else max(1, n // 2)
    cap = max(1, min(cap, 16, budget_bytes // max(per_image_bytes, 1)))
    for nb in range(cap, 0, -1):
        if n % nb == 0:
            return nb
    return 1


def single_layer_forward(x_nchw, gamma, beta, running_mean, running_var,
                         conv_w, eps=1e-5, batch_block=None,
                         matmul_dtype=jnp.bfloat16):
    """x_nchw: (N, C, H, W); conv_w: (G, C, 3, 3) PyTorch OIHW layout."""
    N, C, H, W = x_nchw.shape
    G = conv_w.shape[0]
    HW = H * W
    HWp = _round_up(HW, 128)                 # lane-dense output stores
    PAD = W + 1
    HWP = _round_up(HWp + 2 * PAD, W)        # per-image strip, multiple of W

    # Free reshape: NCHW is already (N, C, H*W)-contiguous.  Lane-pad only if
    # the spatial size is not a multiple of 128 (no-op for 16x16).
    x_flat = x_nchw.reshape(N, C, HW)
    if HWp != HW:
        x_flat = jnp.pad(x_flat, ((0, 0), (0, 0), (0, HWp - HW)))

    # Fold BN parameters (eval mode) in f32.
    gamma32 = gamma.astype(jnp.float32)
    inv_std = 1.0 / jnp.sqrt(running_var.astype(jnp.float32) + eps)
    scale = (gamma32 * inv_std).reshape(C, 1)
    bias = (beta.astype(jnp.float32)
            - running_mean.astype(jnp.float32) * gamma32 * inv_std).reshape(C, 1)

    # One-time weight relayout: (G, C, 3, 3) -> (9, G, C) with tap t = kh*3+kw,
    # in the matmul dtype (bf16 by default for the v6e/v7x MXU).
    w_taps = (jnp.transpose(conv_w, (2, 3, 0, 1))
              .reshape(9, G, C).astype(matmul_dtype))

    # Chip-aware VMEM limit and batch-block selection.
    mm_isz = jnp.dtype(matmul_dtype).itemsize
    x_isz = jnp.dtype(x_nchw.dtype).itemsize
    vmem_cap = _vmem_capacity_bytes()
    vmem_limit = max(32 << 20, min(96 << 20, int(0.75 * vmem_cap)))
    per_img = _per_image_vmem_bytes(C, G, HWp, HWP, x_isz, x_isz, mm_isz)
    NB = (_pick_batch_block(N, per_img, int(0.6 * vmem_limit))
          if batch_block is None else batch_block)
    assert N % NB == 0, (N, NB)

    out_flat = pl.pallas_call(
        functools.partial(_single_layer_kernel, H, W, HW, matmul_dtype),
        out_shape=jax.ShapeDtypeStruct((N, C + G, HWp), x_nchw.dtype),
        grid_spec=pltpu.PrefetchScalarGridSpec(
            num_scalar_prefetch=0,
            grid=(N // NB,),
            in_specs=[
                pl.BlockSpec((NB, C, HWp), lambda b: (b, 0, 0)),
                pl.BlockSpec((C, 1), lambda b: (0, 0)),
                pl.BlockSpec((C, 1), lambda b: (0, 0)),
                pl.BlockSpec((9, G, C), lambda b: (0, 0, 0)),
            ],
            out_specs=pl.BlockSpec((NB, C + G, HWp), lambda b: (b, 0, 0)),
            scratch_shapes=[
                pltpu.VMEM((C, NB * HWP), matmul_dtype),   # staging strip only
            ],
        ),
        compiler_params=pltpu.CompilerParams(
            dimension_semantics=("parallel",),
            vmem_limit_bytes=vmem_limit,
        ),
    )(x_flat, scale, bias, w_taps)

    if HWp != HW:
        out_flat = out_flat[:, :, :HW]
    # Free reshape back to NCHW; the concat already happened inside the kernel.
    return out_flat.reshape(N, C + G, H, W)


def _reference_forward(x_nchw, gamma, beta, running_mean, running_var,
                       conv_w, eps=1e-5):
    """Pure-JAX reference (eval-mode BN + 3x3 same conv + concat)."""
    c = x_nchw.shape[1]
    inv_std = 1.0 / jnp.sqrt(running_var + eps)
    xn = (x_nchw - running_mean.reshape(1, c, 1, 1)) * inv_std.reshape(1, c, 1, 1)
    a = jnp.maximum(xn * gamma.reshape(1, c, 1, 1) + beta.reshape(1, c, 1, 1), 0.0)
    out = lax.conv_general_dilated(
        a, conv_w, window_strides=(1, 1), padding=((1, 1), (1, 1)),
        dimension_numbers=('NCHW', 'OIHW', 'NCHW'))
    return jnp.concatenate([x_nchw, out], axis=1)


if __name__ == "__main__":
    N, C, H, W = 2, 4, 16, 16      # nChannels = 4
    G = 8                          # growthRate = 8

    key = jax.random.PRNGKey(0)
    kx, kg, kb, km, kv, kw = jax.random.split(key, 6)

    x = jax.random.normal(kx, (N, C, H, W), dtype=jnp.float32)
    gamma = 1.0 + 0.1 * jax.random.normal(kg, (C,), dtype=jnp.float32)
    beta = 0.1 * jax.random.normal(kb, (C,), dtype=jnp.float32)
    running_mean = 0.1 * jax.random.normal(km, (C,), dtype=jnp.float32)
    running_var = jnp.abs(jax.random.normal(kv, (C,), dtype=jnp.float32)) + 0.5
    conv_w = (jax.random.normal(kw, (G, C, 3, 3), dtype=jnp.float32)
              * (1.0 / jnp.sqrt(C * 9.0)))

    ref = _reference_forward(x, gamma, beta, running_mean, running_var, conv_w)

    # Exact-math path (f32 MXU operands) -> tight tolerance vs. reference.
    out_f32 = jax.block_until_ready(
        single_layer_forward(x, gamma, beta, running_mean, running_var, conv_w,
                             matmul_dtype=jnp.float32))
    assert out_f32.shape == (N, C + G, H, W), out_f32.shape
    assert jnp.allclose(out_f32, ref, atol=1e-4, rtol=1e-4), "f32 mismatch"

    # Default performance path (bf16 MXU operands, f32 accumulation) ->
    # tolerance covers bf16 operand quantization only.
    out = jax.block_until_ready(
        single_layer_forward(x, gamma, beta, running_mean, running_var, conv_w))
    assert out.shape == (N, C + G, H, W), out.shape
    assert jnp.array_equal(out[:, :C], x), "pass-through channels must be exact"
    assert jnp.allclose(out, ref, atol=5e-2, rtol=5e-2), "bf16 mismatch"

    print("KERNEL_OK")
</pallas_src>

<mosaic_0001>
module attributes {stable_mosaic.version = 11 : i64} {
  func.func @_single_layer_kernel(%arg0: i32, %arg1: memref<1x4x256xf32, #tpu.memory_space<vmem>>, %arg2: memref<4x1xf32, #tpu.memory_space<vmem>>, %arg3: memref<4x1xf32, #tpu.memory_space<vmem>>, %arg4: memref<9x8x4xf32, #tpu.memory_space<vmem>>, %arg5: memref<1x12x256xf32, #tpu.memory_space<vmem>>, %arg6: memref<4x304xf32, #tpu.memory_space<vmem>>) attributes {dimension_semantics = [#tpu.dimension_semantics<parallel>], iteration_bounds = array<i64: 2>, scalar_prefetch = 0 : i64, scratch_operands = 1 : i64, tpu.core_type = #tpu.core_type<tc>, window_params = [{transform_indices = @transform_0, window_bounds = array<i64: 1, 4, 256>}, {pipeline_mode = #tpu.pipeline_mode<synchronous>, transform_indices = @transform_1, window_bounds = array<i64: 4, 1>}, {pipeline_mode = #tpu.pipeline_mode<synchronous>, transform_indices = @transform_2, window_bounds = array<i64: 4, 1>}, {pipeline_mode = #tpu.pipeline_mode<synchronous>, transform_indices = @transform_3, window_bounds = array<i64: 9, 8, 4>}, {transform_indices = @transform_4, window_bounds = array<i64: 1, 12, 256>}]} {
    %c0 = arith.constant 0 : index
    %c0_0 = arith.constant 0 : index
    %c0_1 = arith.constant 0 : index
    %0 = vector.load %arg1[%c0, %c0_0, %c0_1] : memref<1x4x256xf32, #tpu.memory_space<vmem>>, vector<1x4x256xf32>
    %c0_2 = arith.constant 0 : index
    %c0_3 = arith.constant 0 : index
    %1 = vector.load %arg2[%c0_2, %c0_3] : memref<4x1xf32, #tpu.memory_space<vmem>>, vector<4x1xf32>
    %2 = vector.shape_cast %1 : vector<4x1xf32> to vector<1x4x1xf32>
    %c0_4 = arith.constant 0 : index
    %c0_5 = arith.constant 0 : index
    %3 = vector.load %arg3[%c0_4, %c0_5] : memref<4x1xf32, #tpu.memory_space<vmem>>, vector<4x1xf32>
    %4 = vector.shape_cast %3 : vector<4x1xf32> to vector<1x4x1xf32>
    %5 = vector.broadcast %2 : vector<1x4x1xf32> to vector<1x4x256xf32>
    %6 = arith.mulf %0, %5 : vector<1x4x256xf32>
    %7 = vector.broadcast %4 : vector<1x4x1xf32> to vector<1x4x256xf32>
    %8 = arith.addf %6, %7 : vector<1x4x256xf32>
    %cst = arith.constant 0.000000e+00 : f32
    %9 = vector.broadcast %cst : f32 to vector<1x4x256xf32>
    %10 = arith.maximumf %8, %9 : vector<1x4x256xf32>
    %c0_6 = arith.constant 0 : index
    %c0_7 = arith.constant 0 : index
    %c0_8 = arith.constant 0 : index
    %11 = vector.load %arg5[%c0_6, %c0_7, %c0_8] : memref<1x12x256xf32, #tpu.memory_space<vmem>>, vector<1x4x256xf32>
    tpu.vector_store %arg5[%c0_6, %c0_7, %c0_8], %0 {strides = array<i32>} : memref<1x12x256xf32, #tpu.memory_space<vmem>>, vector<1x4x256xf32>,
    %cst_9 = arith.constant 0.000000e+00 : f32
    %12 = vector.broadcast %cst_9 : f32 to vector<4x17xf32>
    %cst_10 = arith.constant 0.000000e+00 : f32
    %13 = vector.broadcast %cst_10 : f32 to vector<4x31xf32>
    %c0_11 = arith.constant 0 : index
    %c0_12 = arith.constant 0 : index
    %14 = vector.load %arg6[%c0_11, %c0_12] : memref<4x304xf32, #tpu.memory_space<vmem>>, vector<4x17xf32>
    tpu.vector_store %arg6[%c0_11, %c0_12], %12 {strides = array<i32>} : memref<4x304xf32, #tpu.memory_space<vmem>>, vector<4x17xf32>,
    %c0_13 = arith.constant 0 : index
    %c273 = arith.constant 273 : index
    %15 = vector.load %arg6[%c0_13, %c273] : memref<4x304xf32, #tpu.memory_space<vmem>>, vector<4x31xf32>
    tpu.vector_store %arg6[%c0_13, %c273], %13 {strides = array<i32>} : memref<4x304xf32, #tpu.memory_space<vmem>>, vector<4x31xf32>,
    %16 = vector.shape_cast %10 : vector<1x4x256xf32> to vector<4x256xf32>
    %c0_14 = arith.constant 0 : index
    %c17 = arith.constant 17 : index
    %17 = vector.load %arg6[%c0_14, %c17] : memref<4x304xf32, #tpu.memory_space<vmem>>, vector<4x256xf32>
    tpu.vector_store %arg6[%c0_14, %c17], %16 {strides = array<i32>} : memref<4x304xf32, #tpu.memory_space<vmem>>, vector<4x256xf32>,
    %18 = tpu.iota {dimensions = array<i32: 1>} : vector<1x256xi32>
    %c16_i32 = arith.constant 16 : i32
    %c0_i32 = arith.constant 0 : i32
    %19 = arith.cmpi eq, %c16_i32, %c0_i32 : i32
    %c1_i32 = arith.constant 1 : i32
    %20 = arith.select %19, %c1_i32, %c16_i32 : i32
    %21 = vector.broadcast %20 : i32 to vector<1x256xi32>
    %22 = arith.remsi %18, %21 : vector<1x256xi32>
    %c0_i32_15 = arith.constant 0 : i32
    %23 = vector.broadcast %c0_i32_15 : i32 to vector<1x256xi32>
    %24 = arith.cmpi ne, %22, %23 : vector<1x256xi32>
    %c0_i32_16 = arith.constant 0 : i32
    %25 = vector.broadcast %c0_i32_16 : i32 to vector<1x256xi32>
    %26 = arith.cmpi slt, %22, %25 : vector<1x256xi32>
    %c0_i32_17 = arith.constant 0 : i32
    %27 = arith.cmpi slt, %20, %c0_i32_17 : i32
    %28 = vector.broadcast %27 : i1 to vector<1x256xi1>
    %29 = vector.broadcast %28 : vector<1x256xi1> to vector<1x256xi1>
    %30 = arith.xori %26, %29 : vector<1x256xi1>
    %31 = arith.andi %30, %24 : vector<1x256xi1>
    %32 = vector.broadcast %20 : i32 to vector<1x256xi32>
    %33 = arith.addi %22, %32 : vector<1x256xi32>
    %34 = arith.select %31, %33, %22 : vector<1x256xi1>, vector<1x256xi32>
    %c1_i32_18 = arith.constant 1 : i32
    %35 = vector.broadcast %c1_i32_18 : i32 to vector<1x256xi32>
    %36 = arith.cmpi sge, %34, %35 : vector<1x256xi32>
    %c14_i32 = arith.constant 14 : i32
    %37 = vector.broadcast %c14_i32 : i32 to vector<1x256xi32>
    %38 = arith.cmpi sle, %34, %37 : vector<1x256xi32>
    %cst_19 = arith.constant 0.000000e+00 : f32
    %39 = vector.broadcast %cst_19 : f32 to vector<8x256xf32>
    %c0_20 = arith.constant 0 : index
    %c0_21 = arith.constant 0 : index
    %40 = vector.load %arg6[%c0_20, %c0_21] : memref<4x304xf32, #tpu.memory_space<vmem>>, vector<4x256xf32>
    %c0_i32_22 = arith.constant 0 : i32
    %41 = arith.sitofp %c0_i32_22 : i32 to f32
    %42 = vector.shape_cast %36 : vector<1x256xi1> to vector<1x256xi1>
    %43 = vector.broadcast %42 : vector<1x256xi1> to vector<4x256xi1>
    %44 = vector.broadcast %41 : f32 to vector<4x256xf32>
    %45 = arith.select %43, %40, %44 : vector<4x256xi1>, vector<4x256xf32>
    %c0_23 = arith.constant 0 : index
    %c0_24 = arith.constant 0 : index
    %c0_25 = arith.constant 0 : index
    %46 = vector.load %arg4[%c0_23, %c0_24, %c0_25] : memref<9x8x4xf32, #tpu.memory_space<vmem>>, vector<1x8x4xf32>
    %47 = vector.shape_cast %46 : vector<1x8x4xf32> to vector<8x4xf32>
    %cst_26 = arith.constant dense<0.000000e+00> : vector<8x256xf32>
    %48 = tpu.matmul %47, %45, %cst_26 {dimension_numbers = #tpu.dot_dimension_numbers<[1], [0], [0], [1], [0, 0, 1, 1], [], []>} : vector<8x4xf32>, vector<4x256xf32>, vector<8x256xf32> -> vector<8x256xf32>
    %49 = arith.addf %39, %48 : vector<8x256xf32>
    %c0_27 = arith.constant 0 : index
    %c1 = arith.constant 1 : index
    %50 = vector.load %arg6[%c0_27, %c1] : memref<4x304xf32, #tpu.memory_space<vmem>>, vector<4x256xf32>
    %c1_28 = arith.constant 1 : index
    %c0_29 = arith.constant 0 : index
    %c0_30 = arith.constant 0 : index
    %51 = vector.load %arg4[%c1_28, %c0_29, %c0_30] : memref<9x8x4xf32, #tpu.memory_space<vmem>>, vector<1x8x4xf32>
    %52 = vector.shape_cast %51 : vector<1x8x4xf32> to vector<8x4xf32>
    %cst_31 = arith.constant dense<0.000000e+00> : vector<8x256xf32>
    %53 = tpu.matmul %52, %50, %cst_31 {dimension_numbers = #tpu.dot_dimension_numbers<[1], [0], [0], [1], [0, 0, 1, 1], [], []>} : vector<8x4xf32>, vector<4x256xf32>, vector<8x256xf32> -> vector<8x256xf32>
    %54 = arith.addf %49, %53 : vector<8x256xf32>
    %c0_32 = arith.constant 0 : index
    %c2 = arith.constant 2 : index
    %55 = vector.load %arg6[%c0_32, %c2] : memref<4x304xf32, #tpu.memory_space<vmem>>, vector<4x256xf32>
    %c0_i32_33 = arith.constant 0 : i32
    %56 = arith.sitofp %c0_i32_33 : i32 to f32
    %57 = vector.shape_cast %38 : vector<1x256xi1> to vector<1x256xi1>
    %58 = vector.broadcast %57 : vector<1x256xi1> to vector<4x256xi1>
    %59 = vector.broadcast %56 : f32 to vector<4x256xf32>
    %60 = arith.select %58, %55, %59 : vector<4x256xi1>, vector<4x256xf32>
    %c2_34 = arith.constant 2 : index
    %c0_35 = arith.constant 0 : index
    %c0_36 = arith.constant 0 : index
    %61 = vector.load %arg4[%c2_34, %c0_35, %c0_36] : memref<9x8x4xf32, #tpu.memory_space<vmem>>, vector<1x8x4xf32>
    %62 = vector.shape_cast %61 : vector<1x8x4xf32> to vector<8x4xf32>
    %cst_37 = arith.constant dense<0.000000e+00> : vector<8x256xf32>
    %63 = tpu.matmul %62, %60, %cst_37 {dimension_numbers = #tpu.dot_dimension_numbers<[1], [0], [0], [1], [0, 0, 1, 1], [], []>} : vector<8x4xf32>, vector<4x256xf32>, vector<8x256xf32> -> vector<8x256xf32>
    %64 = arith.addf %54, %63 : vector<8x256xf32>
    %c0_38 = arith.constant 0 : index
    %c16 = arith.constant 16 : index
    %65 = vector.load %arg6[%c0_38, %c16] : memref<4x304xf32, #tpu.memory_space<vmem>>, vector<4x256xf32>
    %c0_i32_39 = arith.constant 0 : i32
    %66 = arith.sitofp %c0_i32_39 : i32 to f32
    %67 = vector.shape_cast %36 : vector<1x256xi1> to vector<1x256xi1>
    %68 = vector.broadcast %67 : vector<1x256xi1> to vector<4x256xi1>
    %69 = vector.broadcast %66 : f32 to vector<4x256xf32>
    %70 = arith.select %68, %65, %69 : vector<4x256xi1>, vector<4x256xf32>
    %c3 = arith.constant 3 : index
    %c0_40 = arith.constant 0 : index
    %c0_41 = arith.constant 0 : index
    %71 = vector.load %arg4[%c3, %c0_40, %c0_41] : memref<9x8x4xf32, #tpu.memory_space<vmem>>, vector<1x8x4xf32>
    %72 = vector.shape_cast %71 : vector<1x8x4xf32> to vector<8x4xf32>
    %cst_42 = arith.constant dense<0.000000e+00> : vector<8x256xf32>
    %73 = tpu.matmul %72, %70, %cst_42 {dimension_numbers = #tpu.dot_dimension_numbers<[1], [0], [0], [1], [0, 0, 1, 1], [], []>} : vector<8x4xf32>, vector<4x256xf32>, vector<8x256xf32> -> vector<8x256xf32>
    %74 = arith.addf %64, %73 : vector<8x256xf32>
    %c0_43 = arith.constant 0 : index
    %c17_44 = arith.constant 17 : index
    %75 = vector.load %arg6[%c0_43, %c17_44] : memref<4x304xf32, #tpu.memory_space<vmem>>, vector<4x256xf32>
    %c4 = arith.constant 4 : index
    %c0_45 = arith.constant 0 : index
    %c0_46 = arith.constant 0 : index
    %76 = vector.load %arg4[%c4, %c0_45, %c0_46] : memref<9x8x4xf32, #tpu.memory_space<vmem>>, vector<1x8x4xf32>
    %77 = vector.shape_cast %76 : vector<1x8x4xf32> to vector<8x4xf32>
    %cst_47 = arith.constant dense<0.000000e+00> : vector<8x256xf32>
    %78 = tpu.matmul %77, %75, %cst_47 {dimension_numbers = #tpu.dot_dimension_numbers<[1], [0], [0], [1], [0, 0, 1, 1], [], []>} : vector<8x4xf32>, vector<4x256xf32>, vector<8x256xf32> -> vector<8x256xf32>
    %79 = arith.addf %74, %78 : vector<8x256xf32>
    %c0_48 = arith.constant 0 : index
    %c18 = arith.constant 18 : index
    %80 = vector.load %arg6[%c0_48, %c18] : memref<4x304xf32, #tpu.memory_space<vmem>>, vector<4x256xf32>
    %c0_i32_49 = arith.constant 0 : i32
    %81 = arith.sitofp %c0_i32_49 : i32 to f32
    %82 = vector.shape_cast %38 : vector<1x256xi1> to vector<1x256xi1>
    %83 = vector.broadcast %82 : vector<1x256xi1> to vector<4x256xi1>
    %84 = vector.broadcast %81 : f32 to vector<4x256xf32>
    %85 = arith.select %83, %80, %84 : vector<4x256xi1>, vector<4x256xf32>
    %c5 = arith.constant 5 : index
    %c0_50 = arith.constant 0 : index
    %c0_51 = arith.constant 0 : index
    %86 = vector.load %arg4[%c5, %c0_50, %c0_51] : memref<9x8x4xf32, #tpu.memory_space<vmem>>, vector<1x8x4xf32>
    %87 = vector.shape_cast %86 : vector<1x8x4xf32> to vector<8x4xf32>
    %cst_52 = arith.constant dense<0.000000e+00> : vector<8x256xf32>
    %88 = tpu.matmul %87, %85, %cst_52 {dimension_numbers = #tpu.dot_dimension_numbers<[1], [0], [0], [1], [0, 0, 1, 1], [], []>} : vector<8x4xf32>, vector<4x256xf32>, vector<8x256xf32> -> vector<8x256xf32>
    %89 = arith.addf %79, %88 : vector<8x256xf32>
    %c0_53 = arith.constant 0 : index
    %c32 = arith.constant 32 : index
    %90 = vector.load %arg6[%c0_53, %c32] : memref<4x304xf32, #tpu.memory_space<vmem>>, vector<4x256xf32>
    %c0_i32_54 = arith.constant 0 : i32
    %91 = arith.sitofp %c0_i32_54 : i32 to f32
    %92 = vector.shape_cast %36 : vector<1x256xi1> to vector<1x256xi1>
    %93 = vector.broadcast %92 : vector<1x256xi1> to vector<4x256xi1>
    %94 = vector.broadcast %91 : f32 to vector<4x256xf32>
    %95 = arith.select %93, %90, %94 : vector<4x256xi1>, vector<4x256xf32>
    %c6 = arith.constant 6 : index
    %c0_55 = arith.constant 0 : index
    %c0_56 = arith.constant 0 : index
    %96 = vector.load %arg4[%c6, %c0_55, %c0_56] : memref<9x8x4xf32, #tpu.memory_space<vmem>>, vector<1x8x4xf32>
    %97 = vector.shape_cast %96 : vector<1x8x4xf32> to vector<8x4xf32>
    %cst_57 = arith.constant dense<0.000000e+00> : vector<8x256xf32>
    %98 = tpu.matmul %97, %95, %cst_57 {dimension_numbers = #tpu.dot_dimension_numbers<[1], [0], [0], [1], [0, 0, 1, 1], [], []>} : vector<8x4xf32>, vector<4x256xf32>, vector<8x256xf32> -> vector<8x256xf32>
    %99 = arith.addf %89, %98 : vector<8x256xf32>
    %c0_58 = arith.constant 0 : index
    %c33 = arith.constant 33 : index
    %100 = vector.load %arg6[%c0_58, %c33] : memref<4x304xf32, #tpu.memory_space<vmem>>, vector<4x256xf32>
    %c7 = arith.constant 7 : index
    %c0_59 = arith.constant 0 : index
    %c0_60 = arith.constant 0 : index
    %101 = vector.load %arg4[%c7, %c0_59, %c0_60] : memref<9x8x4xf32, #tpu.memory_space<vmem>>, vector<1x8x4xf32>
    %102 = vector.shape_cast %101 : vector<1x8x4xf32> to vector<8x4xf32>
    %cst_61 = arith.constant dense<0.000000e+00> : vector<8x256xf32>
    %103 = tpu.matmul %102, %100, %cst_61 {dimension_numbers = #tpu.dot_dimension_numbers<[1], [0], [0], [1], [0, 0, 1, 1], [], []>} : vector<8x4xf32>, vector<4x256xf32>, vector<8x256xf32> -> vector<8x256xf32>
    %104 = arith.addf %99, %103 : vector<8x256xf32>
    %c0_62 = arith.constant 0 : index
    %c34 = arith.constant 34 : index
    %105 = vector.load %arg6[%c0_62, %c34] : memref<4x304xf32, #tpu.memory_space<vmem>>, vector<4x256xf32>
    %c0_i32_63 = arith.constant 0 : i32
    %106 = arith.sitofp %c0_i32_63 : i32 to f32
    %107 = vector.shape_cast %38 : vector<1x256xi1> to vector<1x256xi1>
    %108 = vector.broadcast %107 : vector<1x256xi1> to vector<4x256xi1>
    %109 = vector.broadcast %106 : f32 to vector<4x256xf32>
    %110 = arith.select %108, %105, %109 : vector<4x256xi1>, vector<4x256xf32>
    %c8 = arith.constant 8 : index
    %c0_64 = arith.constant 0 : index
    %c0_65 = arith.constant 0 : index
    %111 = vector.load %arg4[%c8, %c0_64, %c0_65] : memref<9x8x4xf32, #tpu.memory_space<vmem>>, vector<1x8x4xf32>
    %112 = vector.shape_cast %111 : vector<1x8x4xf32> to vector<8x4xf32>
    %cst_66 = arith.constant dense<0.000000e+00> : vector<8x256xf32>
    %113 = tpu.matmul %112, %110, %cst_66 {dimension_numbers = #tpu.dot_dimension_numbers<[1], [0], [0], [1], [0, 0, 1, 1], [], []>} : vector<8x4xf32>, vector<4x256xf32>, vector<8x256xf32> -> vector<8x256xf32>
    %114 = arith.addf %104, %113 : vector<8x256xf32>
    %c0_67 = arith.constant 0 : index
    %c4_68 = arith.constant 4 : index
    %c0_69 = arith.constant 0 : index
    %115 = vector.load %arg5[%c0_67, %c4_68, %c0_69] : memref<1x12x256xf32, #tpu.memory_space<vmem>>, vector<1x8x256xf32>
    %116 = vector.shape_cast %115 : vector<1x8x256xf32> to vector<8x256xf32>
    %117 = vector.shape_cast %114 : vector<8x256xf32> to vector<1x8x256xf32>
    tpu.vector_store %arg5[%c0_67, %c4_68, %c0_69], %117 {strides = array<i32>} : memref<1x12x256xf32, #tpu.memory_space<vmem>>, vector<1x8x256xf32>,
    return
  }
  func.func @transform_0(%arg0: i32) -> (i32, i32, i32) {
    %c0_i32 = arith.constant 0 : i32
    %c0_i32_0 = arith.constant 0 : i32
    %c0_i32_1 = arith.constant 0 : i32
    return %arg0, %c0_i32, %c0_i32_0 : i32, i32, i32
  }
  func.func @transform_1(%arg0: i32) -> (i32, i32) {
    %c0_i32 = arith.constant 0 : i32
    %c0_i32_0 = arith.constant 0 : i32
    %c0_i32_1 = arith.constant 0 : i32
    return %c0_i32, %c0_i32_0 : i32, i32
  }
  func.func @transform_2(%arg0: i32) -> (i32, i32) {
    %c0_i32 = arith.constant 0 : i32
    %c0_i32_0 = arith.constant 0 : i32
    %c0_i32_1 = arith.constant 0 : i32
    return %c0_i32, %c0_i32_0 : i32, i32
  }
  func.func @transform_3(%arg0: i32) -> (i32, i32, i32) {
    %c0_i32 = arith.constant 0 : i32
    %c0_i32_0 = arith.constant 0 : i32
    %c0_i32_1 = arith.constant 0 : i32
    %c0_i32_2 = arith.constant 0 : i32
    return %c0_i32, %c0_i32_0, %c0_i32_1 : i32, i32, i32
  }
  func.func @transform_4(%arg0: i32) -> (i32, i32, i32) {
    %c0_i32 = arith.constant 0 : i32
    %c0_i32_0 = arith.constant 0 : i32
    %c0_i32_1 = arith.constant 0 : i32
    return %arg0, %c0_i32, %c0_i32_0 : i32, i32, i32
  }
}

</mosaic_0001>

<llo_original>
// kernel: tpu_custom_call.1
$region0: #{tpu_custom_call.1}
  #allocation0 [shape = 'u32[]', space=smem, size = 0x4, offset = 0x4, fixed_abs, tag = 'smem constant byte address 0x4 - core index']
  #allocation1 [shape = 'u32[144,128]{1,0:T(1,128)}', space=vmem, size = 0x12000, scoped, tag = 'internal scratch']
  #allocation2 [shape = 'f32[4,304]{1,0:T(4,128)}', space=vmem, size = 0x1800, scoped, tag = 'scratch operand']
  %s0 = inlined_call_operand.vmem [shape: f32[2,4,256], index: 0, kind: input, shape index: {}]
  %s1 = inlined_call_operand.vmem [shape: f32[4,1], index: 1, kind: input, shape index: {}]
  %s2 = inlined_call_operand.vmem [shape: f32[4,1], index: 2, kind: input, shape index: {}]
  %s3 = inlined_call_operand.vmem [shape: f32[9,8,4], index: 3, kind: input, shape index: {}]
  %s4 = inlined_call_operand.vmem [shape: f32[2,12,256], index: 4, kind: output, shape index: {}]
  %s5 = sld [smem:[#allocation0]]
  $region49: #{tpu_custom_call.1} parent=0
    _
  %s7 = ssub.s32 1, %s5
  %s8 = scalar_select 0, %s7, %s5
  loop: start=0, step=1, limit=4
  $region2: #{tpu_custom_call.1} parent=0 // loop_pre_header
    _
  $region3: #{tpu_custom_call.1} parent=0 // loop_header
    %s10 = sphi 0, %s14
    %p11 = scmp.ge.s32.totalorder %s10, 4
    %s20 = sphi 0, %s22
    %s23 = sphi 0, %s20
    %s24 = sphi 0, %s23
    %s40 = sphi 0, %s24
    %s44 = sphi 0, %s44
    %s46 = sphi 0, %s44
    %s47 = sphi 0, %s46
    %s61 = sphi 0, %s47
    %s65 = sphi 0, %s65
    %s67 = sphi 0, %s65
    %s68 = sphi 0, %s67
    %s82 = sphi 0, %s68
    %s86 = sphi 0, %s86
    %s88 = sphi 0, %s86
    %s89 = sphi 0, %s88
    %s103 = sphi 0, %s89
    %s109 = sphi 0, %s111
    %s112 = sphi 0, %s109
    %s113 = sphi 0, %s112
    %s129 = sphi 0, %s113
  $region4: #{tpu_custom_call.1} parent=0 // loop_header_branch
    %13 = sbr.rel (%p11) target = $region8
  $region5: #{tpu_custom_call.1} parent=0 // loop_body
    %s15 = ssub.s32 %s10, 1
    %s16 = ssub.s32 %s10, 2
    %s17 = sadd.s32 %s10, 1
    %s18 = ssub.s32 %s10, %s17
    %p19 = scmp.eq.s32.totalorder %s18, 0
    %s21 = sadd.s32 %s20, 1
    %s22 = scalar_select %p19, %s20, %s21
    %p25 = pneg %p19
    %p26 = scmp.eq.s32.totalorder %s10, 1
    %p27 = por %p25, %p26
    %p28 = scmp.ne.s32.totalorder %s20, %s23
    %p29 = scmp.eq.s32.totalorder %s10, 0
    %p30 = por %p28, %p29
    %p31 = scmp.ne.s32.totalorder %s20, %s23
    %p32 = scmp.eq.s32.totalorder %s15, 1
    %p33 = por %p31, %p32
    %p34 = scmp.ne.s32.totalorder %s23, %s24
    %p35 = scmp.eq.s32.totalorder %s15, 0
    %p36 = por %p34, %p35
    %p37 = scmp.ne.s32.totalorder %s23, %s24
    %p38 = scmp.eq.s32.totalorder %s16, 1
    %p39 = por %p37, %p38
    %p41 = scmp.ne.s32.totalorder %s24, %s40
    %p42 = scmp.eq.s32.totalorder %s16, 0
    %p43 = por %p41, %p42
    %s45 = sadd.s32 %s44, 1
    %p48 = scmp.eq.s32.totalorder %s10, 1
    %p49 = scmp.ne.s32.totalorder %s44, %s46
    %p50 = scmp.eq.s32.totalorder %s10, 0
    %p51 = por %p49, %p50
    %p52 = scmp.ne.s32.totalorder %s44, %s46
    %p53 = scmp.eq.s32.totalorder %s15, 1
    %p54 = por %p52, %p53
    %p55 = scmp.ne.s32.totalorder %s46, %s47
    %p56 = scmp.eq.s32.totalorder %s15, 0
    %p57 = por %p55, %p56
    %p58 = scmp.ne.s32.totalorder %s46, %s47
    %p59 = scmp.eq.s32.totalorder %s16, 1
    %p60 = por %p58, %p59
    %p62 = scmp.ne.s32.totalorder %s47, %s61
    %p63 = scmp.eq.s32.totalorder %s16, 0
    %p64 = por %p62, %p63
    %s66 = sadd.s32 %s65, 1
    %p69 = scmp.eq.s32.totalorder %s10, 1
    %p70 = scmp.ne.s32.totalorder %s65, %s67
    %p71 = scmp.eq.s32.totalorder %s10, 0
    %p72 = por %p70, %p71
    %p73 = scmp.ne.s32.totalorder %s65, %s67
    %p74 = scmp.eq.s32.totalorder %s15, 1
    %p75 = por %p73, %p74
    %p76 = scmp.ne.s32.totalorder %s67, %s68
    %p77 = scmp.eq.s32.totalorder %s15, 0
    %p78 = por %p76, %p77
    %p79 = scmp.ne.s32.totalorder %s67, %s68
    %p80 = scmp.eq.s32.totalorder %s16, 1
    %p81 = por %p79, %p80
    %p83 = scmp.ne.s32.totalorder %s68, %s82
    %p84 = scmp.eq.s32.totalorder %s16, 0
    %p85 = por %p83, %p84
    %s87 = sadd.s32 %s86, 1
    %p90 = scmp.eq.s32.totalorder %s10, 1
    %p91 = scmp.ne.s32.totalorder %s86, %s88
    %p92 = scmp.eq.s32.totalorder %s10, 0
    %p93 = por %p91, %p92
    %p94 = scmp.ne.s32.totalorder %s86, %s88
    %p95 = scmp.eq.s32.totalorder %s15, 1
    %p96 = por %p94, %p95
    %p97 = scmp.ne.s32.totalorder %s88, %s89
    %p98 = scmp.eq.s32.totalorder %s15, 0
    %p99 = por %p97, %p98
    %p100 = scmp.ne.s32.totalorder %s88, %s89
    %p101 = scmp.eq.s32.totalorder %s16, 1
    %p102 = por %p100, %p101
    %p104 = scmp.ne.s32.totalorder %s89, %s103
    %p105 = scmp.eq.s32.totalorder %s16, 0
    %p106 = por %p104, %p105
    %s107 = ssub.s32 %s10, %s17
    %p108 = scmp.eq.s32.totalorder %s107, 0
    %s110 = sadd.s32 %s109, 1
    %s111 = scalar_select %p108, %s109, %s110
    %p114 = pneg %p108
    %p115 = scmp.eq.s32.totalorder %s10, 1
    %p116 = por %p114, %p115
    %p117 = scmp.ne.s32.totalorder %s109, %s112
    %p118 = scmp.eq.s32.totalorder %s10, 0
    %p119 = por %p117, %p118
    %p120 = scmp.ne.s32.totalorder %s109, %s112
    %p121 = scmp.eq.s32.totalorder %s15, 1
    %p122 = por %p120, %p121
    %p123 = scmp.ne.s32.totalorder %s112, %s113
    %p124 = scmp.eq.s32.totalorder %s15, 0
    %p125 = por %p123, %p124
    %p126 = scmp.ne.s32.totalorder %s112, %s113
    %p127 = scmp.eq.s32.totalorder %s16, 1
    %p128 = por %p126, %p127
    %p130 = scmp.ne.s32.totalorder %s113, %s129
    %p131 = scmp.eq.s32.totalorder %s16, 0
    %p132 = por %p130, %p131
    %p133 = scmp.le.s32.totalorder 1, %s10
    %p134 = scmp.lt.s32.totalorder %s10, 3
    %p135 = pnand %p133, %p134
    %p136 = pneg %p135
    // Predicated region
    $region9: #{tpu_custom_call.1} parent=5 // pred_check
      _
    $region10: #{tpu_custom_call.1} parent=5 // pred_check_branch
      %138 = sbr.rel (%p135) target = $region12
    $region11: #{tpu_custom_call.1} parent=5 // pred_region
      %s139 = ssub.s32 %s10, 1
      // Predicated region
      $region13: #{tpu_custom_call.1} parent=11 // pred_check
        %p140 = pneg %p57
      $region14: #{tpu_custom_call.1} parent=11 // pred_check_branch
        %142 = sbr.rel (%p140) target = $region16
      $region15: #{tpu_custom_call.1} parent=11 // pred_region
        _
      $region16: #{tpu_custom_call.1} parent=11 // pred_fallthru
        _
      // Predicated region
      $region17: #{tpu_custom_call.1} parent=11 // pred_check
        %p143 = pneg %p78
      $region18: #{tpu_custom_call.1} parent=11 // pred_check_branch
        %145 = sbr.rel (%p143) target = $region20
      $region19: #{tpu_custom_call.1} parent=11 // pred_region
        _
      $region20: #{tpu_custom_call.1} parent=11 // pred_fallthru
        _
      // Predicated region
      $region21: #{tpu_custom_call.1} parent=11 // pred_check
        %p146 = pneg %p99
      $region22: #{tpu_custom_call.1} parent=11 // pred_check_branch
        %148 = sbr.rel (%p146) target = $region24
      $region23: #{tpu_custom_call.1} parent=11 // pred_region
        _
      $region24: #{tpu_custom_call.1} parent=11 // pred_fallthru
        _
    $region12: #{tpu_custom_call.1} parent=5 // pred_fallthru
      _
    %p149 = scmp.lt.s32.totalorder %s10, 2
    // Predicated region
    $region25: #{tpu_custom_call.1} parent=5 // pred_check
      %p150 = pneg %p149
    $region26: #{tpu_custom_call.1} parent=5 // pred_check_branch
      %152 = sbr.rel (%p150) target = $region28
    $region27: #{tpu_custom_call.1} parent=5 // pred_region
      // Predicated region
      $region29: #{tpu_custom_call.1} parent=27 // pred_check
        %p153 = pneg %p30
      $region30: #{tpu_custom_call.1} parent=27 // pred_check_branch
        %155 = sbr.rel (%p153) target = $region32
      $region31: #{tpu_custom_call.1} parent=27 // pred_region
        %p156 = scmp.lt.s32.totalorder %s10, 1
        %s157 = scalar_select %p156, %s10, 1
        %s158 = smul.addr %s157, 2
        %s159 = smul.addr %s158, 4
        %s160 = scalar_lea.vmem %s0, %s159
      $region32: #{tpu_custom_call.1} parent=27 // pred_fallthru
        _
    $region28: #{tpu_custom_call.1} parent=5 // pred_fallthru
      _
    %p161 = scmp.le.s32.totalorder 1, %s10
    %p162 = scmp.lt.s32.totalorder %s10, 3
    %p163 = pnand %p161, %p162
    %p164 = pneg %p163
    // Predicated region
    $region33: #{tpu_custom_call.1} parent=5 // pred_check
      _
    $region34: #{tpu_custom_call.1} parent=5 // pred_check_branch
      %166 = sbr.rel (%p163) target = $region36
    $region35: #{tpu_custom_call.1} parent=5 // pred_region
      %s167 = ssub.s32 %s10, 1
      %p168 = scmp.lt.s32.totalorder %s15, 1
      %s169 = scalar_select %p168, %s15, 1
      %s170 = smul.addr %s169, 2
      %s171 = smul.addr %s170, 4
      %s172 = scalar_lea.vmem %s0, %s171
      %p173 = pneg %p36
      %p174 = pneg %p33
      %p175 = pneg %p57
      %p176 = pneg %p54
      %p177 = pneg %p78
      %p178 = pneg %p75
      %p179 = pneg %p99
      %p180 = pneg %p96
      %p181 = pneg %p125
      %p182 = pneg %p122
      %p183 = scmp.lt.s32.totalorder %s15, 1
      %s184 = scalar_select %p183, %s15, 1
      %s185 = smul.addr %s184, 4
      %s186 = smul.addr %s185, 8
      %s187 = scalar_lea.vmem %s4, %s186
      %p188 = scmp.lt.s32.totalorder %s15, 1
      %s189 = scalar_select %p188, %s15, 1
      %s190 = smul.addr %s189, 2
      %s191 = smul.addr %s190, 4
      %s192 = scalar_lea.vmem %s0, %s191
      %p193 = scmp.lt.s32.totalorder %s15, 1
      %s194 = scalar_select %p193, %s15, 1
      %s195 = smul.addr %s194, 4
      %s196 = smul.addr %s195, 8
      %s197 = scalar_lea.vmem %s4, %s196
      %v198 = vld [vmem:[%s192] sm:$0xff]
      %v199 = vld [vmem:[%s1] sm:$0xf]
      %v200 = vld [vmem:[%s2] sm:$0xf]
      %202 = vset.pattern.permute.xlu0 0
      %203 = vperm.xlu0 %202, %v199
      %v204 = vpop.permute.xlu0 %203
      %v206 = vunpack.c.l.s4 839922192
      %v207 = vunpack.c.0.s8 %v206
      %v208 = vlaneseq
      %v209 = vshrl.u32 %v208, 7
      %v210 = vsub.s32 %v207, %v209
      %v211 = vrot.slane %v204, %v210
      %v213 = vmul.f32 %v198, %v211
      %215 = vset.pattern.permute.xlu0 0
      %216 = vperm.xlu0 %215, %v200
      %v217 = vpop.permute.xlu0 %216
      %v219 = vunpack.c.l.s4 839922192
      %v220 = vunpack.c.0.s8 %v219
      %v221 = vlaneseq
      %v222 = vshrl.u32 %v221, 7
      %v223 = vsub.s32 %v220, %v222
      %v224 = vrot.slane %v217, %v223
      %v226 = vadd.f32 %v213, %v224
      %v227 = vmax.f32 %v226, 0.0
      %v229 = vcombine.high %v198, %v198
      %231 = vst [vmem:[%s197] sm:$0xf] %v198
      %232 = vst [vmem:[%s197 + $0x8] sm:$0xf] %v229
      %vm233 = vcmask 134144
      %234 = vst.msk [vmem:[#allocation2] sm:$0xf] %vm233, 0.0
      %vm235 = vcmask 388232
      %236 = vst.msk [vmem:[#allocation2 + $0x8] sm:$0xf] %vm235, 0.0
      %238 = vrot.lane.b32.xlu0 %v227, 17
      %v239 = vpop.permute.xlu0 %238
      %v240 = vrot.slane %v239, 4
      %vm241 = vcmask 138240
      %v242 = vsel %vm241, %v240, %v239
      %vm245 = vcmask 1043592
      %vm246 = vcmask 1047556
      %vm247 = vmor %vm246, %vm245
      %248 = vst.msk [vmem:[#allocation2] sm:$0xff] %vm247, %v242
      %249 = vst.msk [vmem:[#allocation2 + $0x8] sm:$0xf] %vm233, %v240
      %v250 = vlaneseq
      %v251 = vand.u32 %v250, 127
      %v252 = vadd.s32 %v251, 128
      %vm253 = vcmp.lt.s32.totalorder %v251, 0
      %v254 = vsub.s32 0, %v251
      %v255 = vsel %vm253, %v254, %v251
      %v256 = vshrl.u32 %v255, 4
      %v257 = vand.u32 %v255, 15
      %v258 = vsub.s32 0, %v257
      %v259 = vsel %vm253, %v258, %v257
      %vm260 = vcmp.lt.s32.totalorder %v252, 0
      %v261 = vsub.s32 0, %v252
      %v262 = vsel %vm260, %v261, %v252
      %v263 = vshrl.u32 %v262, 4
      %v264 = vand.u32 %v262, 15
      %v265 = vsub.s32 0, %v264
      %v266 = vsel %vm260, %v265, %v264
      %vm267 = vcmp.ne.s32.totalorder %v259, 0
      %vm268 = vcmp.ne.s32.totalorder %v266, 0
      %vm269 = vcmp.lt.s32.totalorder %v259, 0
      %vm270 = vcmp.lt.s32.totalorder %v266, 0
      %vm271 = vmand %vm269, %vm267
      %vm272 = vmand %vm270, %vm268
      %v273 = vadd.s32 %v259, 16
      %v274 = vadd.s32 %v266, 16
      %v275 = vsel %vm271, %v273, %v259
      %v276 = vsel %vm272, %v274, %v266
      %vm277 = vcmp.ge.s32.totalorder %v275, 1
      %vm278 = vcmp.ge.s32.totalorder %v276, 1
      %vm279 = vcmp.le.s32.totalorder %v275, 14
      %vm280 = vcmp.le.s32.totalorder %v276, 14
      %v281 = vld [vmem:[#allocation2] sm:$0xff]
      %v282 = vsel %vm277, 1, 0
      %v283 = vsel %vm278, 1, 0
      %vm284 = vcmp.eq.s32.totalorder %v282, 1
      %vm285 = vcmp.eq.s32.totalorder %v283, 1
      %v287 = vcombine.high %v281, %v281
      %v289 = vsel %vm284, %v281, 0.0
      %v290 = vsel %vm285, %v287, 0.0
      %v291 = vld [vmem:[%s3] sm:$0xff]
      %v292 = vld [vmem:[#allocation2 + $0x8] sm:$0xf]
      %s293 = scalar_lea.vmem %s3, 8
      %v294 = vld [vmem:[%s293] sm:$0xff]
      %296 = vrot.lane.b32.xlu0 %v281, 127
      %v297 = vpop.permute.xlu0 %296
      %298 = vrot.lane.b32.xlu0 %v287, 127
      %v299 = vpop.permute.xlu0 %298
      %300 = vrot.lane.b32.xlu0 %v292, 127
      %v301 = vpop.permute.xlu0 %300
      %vm302 = vcmask 1039360
      %v303 = vsel %vm302, %v297, %v299
      %v304 = vsel %vm302, %v299, %v301
      %vm305 = vcmask 31744
      %v307 = vsel %vm305, %v294, 0
      %vm309 = vcmask 1043456
      %v310 = vsel %vm309, %v303, 0
      %v312 = vsel %vm309, %v304, 0
      %314 = vmatprep.subr.mxu0 0.0
      %315 = vmatpush1.msra.mxu0 0.0
      %316 = vmatprep.subr.mxu0 0.0
      %317 = vmatpush1.msra.mxu0 0.0
      %318 = vmatprep.subr.mxu0 0.0
      %319 = vmatpush1.msra.mxu0 0.0
      %320 = vmatprep.subr.mxu0 0.0
      %321 = vmatpush1.msra.mxu0 0.0
      %322 = vmatprep.subr.mxu0 0.0
      %323 = vmatpush1.msra.mxu0 0.0
      %324 = vmatprep.subr.mxu0 0.0
      %325 = vmatpush1.msra.mxu0 0.0
      %326 = vmatprep.subr.mxu0 0.0
      %327 = vmatpush1.msra.mxu0 0.0
      %328 = vmatprep.subr.mxu0 0.0
      %329 = vmatpush1.msra.mxu0 0.0
      %330 = vmatprep.subr.mxu0 0.0
      %331 = vmatpush1.msra.mxu0 0.0
      %332 = vmatprep.subr.mxu0 0.0
      %333 = vmatpush1.msra.mxu0 0.0
      %334 = vmatprep.subr.mxu0 0.0
      %335 = vmatpush1.msra.mxu0 0.0
      %336 = vmatprep.subr.mxu0 0.0
      %337 = vmatpush1.msra.mxu0 0.0
      %338 = vmatprep.subr.mxu0 0.0
      %339 = vmatpush1.msra.mxu0 0.0
      %340 = vmatprep.subr.mxu0 0.0
      %341 = vmatpush1.msra.mxu0 0.0
      %342 = vmatprep.subr.mxu0 0.0
      %343 = vmatpush1.msra.mxu0 0.0
      %344 = vmatprep.subr.mxu0 %v312
      %345 = vmatpush1.msra.mxu0 %v310
      %346 = vmatprep.subr.mxu0 0.0
      %347 = vmatpush2.msra.mxu0 0.0
      %348 = vmatprep.subr.mxu0 0.0
      %349 = vmatpush2.msra.mxu0 0.0
      %350 = vmatprep.subr.mxu0 0.0
      %351 = vmatpush2.msra.mxu0 0.0
      %352 = vmatprep.subr.mxu0 0.0
      %353 = vmatpush2.msra.mxu0 0.0
      %354 = vmatprep.subr.mxu0 0.0
      %355 = vmatpush2.msra.mxu0 0.0
      %356 = vmatprep.subr.mxu0 0.0
      %357 = vmatpush2.msra.mxu0 0.0
      %358 = vmatprep.subr.mxu0 0.0
      %359 = vmatpush2.msra.mxu0 0.0
      %360 = vmatprep.subr.mxu0 0.0
      %361 = vmatpush2.msra.mxu0 0.0
      %362 = vmatprep.subr.mxu0 0.0
      %363 = vmatpush2.msra.mxu0 0.0
      %364 = vmatprep.subr.mxu0 0.0
      %365 = vmatpush2.msra.mxu0 0.0
      %366 = vmatprep.subr.mxu0 0.0
      %367 = vmatpush2.msra.mxu0 0.0
      %368 = vmatprep.subr.mxu0 0.0
      %369 = vmatpush2.msra.mxu0 0.0
      %370 = vmatprep.subr.mxu0 0.0
      %371 = vmatpush2.msra.mxu0 0.0
      %372 = vmatprep.subr.mxu0 0.0
      %373 = vmatpush2.msra.mxu0 0.0
      %374 = vmatprep.subr.mxu0 0.0
      %375 = vmatpush2.msra.mxu0 0.0
      %376 = vmatprep.subr.mxu0 0.0
      %377 = vmatpush2.msra.mxu0 0.0
      %378 = vmatprep.mubr.f32.mxu0 0.0
      %379 = vmatmul.mubr.f32.gmra.mxu0 %v307
      %v380 = vpop.f32.mrf.mxu0
      %v381 = vadd.f32 0.0, %v380
      %v382 = vpop.f32.mrf.mxu0
      %v383 = vadd.f32 0.0, %v382
      %384 = vdwg.mxu0
      %v386 = vsel %vm305, %v291, 0
      %v389 = vsel %vm309, %v289, 0
      %v392 = vsel %vm309, %v290, 0
      %394 = vmatprep.subr.mxu0 0.0
      %395 = vmatpush1.msra.mxu0 0.0
      %396 = vmatprep.subr.mxu0 0.0
      %397 = vmatpush1.msra.mxu0 0.0
      %398 = vmatprep.subr.mxu0 0.0
      %399 = vmatpush1.msra.mxu0 0.0
      %400 = vmatprep.subr.mxu0 0.0
      %401 = vmatpush1.msra.mxu0 0.0
      %402 = vmatprep.subr.mxu0 0.0
      %403 = vmatpush1.msra.mxu0 0.0
      %404 = vmatprep.subr.mxu0 0.0
      %405 = vmatpush1.msra.mxu0 0.0
      %406 = vmatprep.subr.mxu0 0.0
      %407 = vmatpush1.msra.mxu0 0.0
      %408 = vmatprep.subr.mxu0 0.0
      %409 = vmatpush1.msra.mxu0 0.0
      %410 = vmatprep.subr.mxu0 0.0
      %411 = vmatpush1.msra.mxu0 0.0
      %412 = vmatprep.subr.mxu0 0.0
      %413 = vmatpush1.msra.mxu0 0.0
      %414 = vmatprep.subr.mxu0 0.0
      %415 = vmatpush1.msra.mxu0 0.0
      %416 = vmatprep.subr.mxu0 0.0
      %417 = vmatpush1.msra.mxu0 0.0
      %418 = vmatprep.subr.mxu0 0.0
      %419 = vmatpush1.msra.mxu0 0.0
      %420 = vmatprep.subr.mxu0 0.0
      %421 = vmatpush1.msra.mxu0 0.0
      %422 = vmatprep.subr.mxu0 0.0
      %423 = vmatpush1.msra.mxu0 0.0
      %424 = vmatprep.subr.mxu0 %v392
      %425 = vmatpush1.msra.mxu0 %v389
      %426 = vmatprep.subr.mxu0 0.0
      %427 = vmatpush2.msra.mxu0 0.0
      %428 = vmatprep.subr.mxu0 0.0
      %429 = vmatpush2.msra.mxu0 0.0
      %430 = vmatprep.subr.mxu0 0.0
      %431 = vmatpush2.msra.mxu0 0.0
      %432 = vmatprep.subr.mxu0 0.0
      %433 = vmatpush2.msra.mxu0 0.0
      %434 = vmatprep.subr.mxu0 0.0
      %435 = vmatpush2.msra.mxu0 0.0
      %436 = vmatprep.subr.mxu0 0.0
      %437 = vmatpush2.msra.mxu0 0.0
      %438 = vmatprep.subr.mxu0 0.0
      %439 = vmatpush2.msra.mxu0 0.0
      %440 = vmatprep.subr.mxu0 0.0
      %441 = vmatpush2.msra.mxu0 0.0
      %442 = vmatprep.subr.mxu0 0.0
      %443 = vmatpush2.msra.mxu0 0.0
      %444 = vmatprep.subr.mxu0 0.0
      %445 = vmatpush2.msra.mxu0 0.0
      %446 = vmatprep.subr.mxu0 0.0
      %447 = vmatpush2.msra.mxu0 0.0
      %448 = vmatprep.subr.mxu0 0.0
      %449 = vmatpush2.msra.mxu0 0.0
      %450 = vmatprep.subr.mxu0 0.0
      %451 = vmatpush2.msra.mxu0 0.0
      %452 = vmatprep.subr.mxu0 0.0
      %453 = vmatpush2.msra.mxu0 0.0
      %454 = vmatprep.subr.mxu0 0.0
      %455 = vmatpush2.msra.mxu0 0.0
      %456 = vmatprep.subr.mxu0 0.0
      %457 = vmatpush2.msra.mxu0 0.0
      %458 = vmatprep.mubr.f32.mxu0 0.0
      %459 = vmatmul.mubr.f32.gmra.mxu0 %v386
      %v460 = vpop.f32.mrf.mxu0
      %v461 = vadd.f32 %v381, %v460
      %v462 = vpop.f32.mrf.mxu0
      %v463 = vadd.f32 %v383, %v462
      %464 = vdwg.mxu0
      %v465 = vld [vmem:[#allocation2] sm:$0xff]
      %v466 = vld [vmem:[#allocation2 + $0x8] sm:$0xf]
      %v467 = vsel %vm279, 1, 0
      %v468 = vsel %vm280, 1, 0
      %vm469 = vcmp.eq.s32.totalorder %v467, 1
      %vm470 = vcmp.eq.s32.totalorder %v468, 1
      %v473 = vcombine.high %v465, %v465
      %474 = vrot.lane.b32.xlu0 %v465, 126
      %v475 = vpop.permute.xlu0 %474
      %476 = vrot.lane.b32.xlu0 %v473, 126
      %v477 = vpop.permute.xlu0 %476
      %478 = vrot.lane.b32.xlu0 %v466, 126
      %v479 = vpop.permute.xlu0 %478
      %vm480 = vcmask 1031168
      %v481 = vsel %vm480, %v475, %v477
      %v482 = vsel %vm480, %v477, %v479
      %v485 = vsel %vm469, %v481, 0.0
      %v486 = vsel %vm470, %v482, 0.0
      %s487 = scalar_lea.vmem %s3, 16
      %v488 = vld [vmem:[%s487] sm:$0xff]
      %v490 = vsel %vm305, %v488, 0
      %v493 = vsel %vm309, %v485, 0
      %v496 = vsel %vm309, %v486, 0
      %498 = vmatprep.subr.mxu0 0.0
      %499 = vmatpush1.msra.mxu0 0.0
      %500 = vmatprep.subr.mxu0 0.0
      %501 = vmatpush1.msra.mxu0 0.0
      %502 = vmatprep.subr.mxu0 0.0
      %503 = vmatpush1.msra.mxu0 0.0
      %504 = vmatprep.subr.mxu0 0.0
      %505 = vmatpush1.msra.mxu0 0.0
      %506 = vmatprep.subr.mxu0 0.0
      %507 = vmatpush1.msra.mxu0 0.0
      %508 = vmatprep.subr.mxu0 0.0
      %509 = vmatpush1.msra.mxu0 0.0
      %510 = vmatprep.subr.mxu0 0.0
      %511 = vmatpush1.msra.mxu0 0.0
      %512 = vmatprep.subr.mxu0 0.0
      %513 = vmatpush1.msra.mxu0 0.0
      %514 = vmatprep.subr.mxu0 0.0
      %515 = vmatpush1.msra.mxu0 0.0
      %516 = vmatprep.subr.mxu0 0.0
      %517 = vmatpush1.msra.mxu0 0.0
      %518 = vmatprep.subr.mxu0 0.0
      %519 = vmatpush1.msra.mxu0 0.0
      %520 = vmatprep.subr.mxu0 0.0
      %521 = vmatpush1.msra.mxu0 0.0
      %522 = vmatprep.subr.mxu0 0.0
      %523 = vmatpush1.msra.mxu0 0.0
      %524 = vmatprep.subr.mxu0 0.0
      %525 = vmatpush1.msra.mxu0 0.0
      %526 = vmatprep.subr.mxu0 0.0
      %527 = vmatpush1.msra.mxu0 0.0
      %528 = vmatprep.subr.mxu0 %v496
      %529 = vmatpush1.msra.mxu0 %v493
      %530 = vmatprep.subr.mxu0 0.0
      %531 = vmatpush2.msra.mxu0 0.0
      %532 = vmatprep.subr.mxu0 0.0
      %533 = vmatpush2.msra.mxu0 0.0
      %534 = vmatprep.subr.mxu0 0.0
      %535 = vmatpush2.msra.mxu0 0.0
      %536 = vmatprep.subr.mxu0 0.0
      %537 = vmatpush2.msra.mxu0 0.0
      %538 = vmatprep.subr.mxu0 0.0
      %539 = vmatpush2.msra.mxu0 0.0
      %540 = vmatprep.subr.mxu0 0.0
      %541 = vmatpush2.msra.mxu0 0.0
      %542 = vmatprep.subr.mxu0 0.0
      %543 = vmatpush2.msra.mxu0 0.0
      %544 = vmatprep.subr.mxu0 0.0
      %545 = vmatpush2.msra.mxu0 0.0
      %546 = vmatprep.subr.mxu0 0.0
      %547 = vmatpush2.msra.mxu0 0.0
      %548 = vmatprep.subr.mxu0 0.0
      %549 = vmatpush2.msra.mxu0 0.0
      %550 = vmatprep.subr.mxu0 0.0
      %551 = vmatpush2.msra.mxu0 0.0
      %552 = vmatprep.subr.mxu0 0.0
      %553 = vmatpush2.msra.mxu0 0.0
      %554 = vmatprep.subr.mxu0 0.0
      %555 = vmatpush2.msra.mxu0 0.0
      %556 = vmatprep.subr.mxu0 0.0
      %557 = vmatpush2.msra.mxu0 0.0
      %558 = vmatprep.subr.mxu0 0.0
      %559 = vmatpush2.msra.mxu0 0.0
      %560 = vmatprep.subr.mxu0 0.0
      %561 = vmatpush2.msra.mxu0 0.0
      %562 = vmatprep.mubr.f32.mxu0 0.0
      %563 = vmatmul.mubr.f32.gmra.mxu0 %v490
      %v564 = vpop.f32.mrf.mxu0
      %v565 = vadd.f32 0.0, %v564
      %v566 = vpop.f32.mrf.mxu0
      %v567 = vadd.f32 0.0, %v566
      %568 = vdwg.mxu0
      %v569 = vadd.f32 %v461, %v565
      %v570 = vadd.f32 %v463, %v567
      %v571 = vld [vmem:[#allocation2] sm:$0xff]
      %v572 = vld [vmem:[#allocation2 + $0x8] sm:$0xf]
      %v575 = vcombine.high %v571, %v571
      %576 = vrot.lane.b32.xlu0 %v571, 112
      %v577 = vpop.permute.xlu0 %576
      %578 = vrot.lane.b32.xlu0 %v575, 112
      %v579 = vpop.permute.xlu0 %578
      %580 = vrot.lane.b32.xlu0 %v572, 112
      %v581 = vpop.permute.xlu0 %580
      %vm582 = vcmask 916480
      %v583 = vsel %vm582, %v577, %v579
      %v584 = vsel %vm582, %v579, %v581
      %v587 = vsel %vm284, %v583, 0.0
      %v588 = vsel %vm285, %v584, 0.0
      %s589 = scalar_lea.vmem %s3, 24
      %v590 = vld [vmem:[%s589] sm:$0xff]
      %v592 = vsel %vm305, %v590, 0
      %v595 = vsel %vm309, %v587, 0
      %v598 = vsel %vm309, %v588, 0
      %600 = vmatprep.subr.mxu0 0.0
      %601 = vmatpush1.msra.mxu0 0.0
      %602 = vmatprep.subr.mxu0 0.0
      %603 = vmatpush1.msra.mxu0 0.0
      %604 = vmatprep.subr.mxu0 0.0
      %605 = vmatpush1.msra.mxu0 0.0
      %606 = vmatprep.subr.mxu0 0.0
      %607 = vmatpush1.msra.mxu0 0.0
      %608 = vmatprep.subr.mxu0 0.0
      %609 = vmatpush1.msra.mxu0 0.0
      %610 = vmatprep.subr.mxu0 0.0
      %611 = vmatpush1.msra.mxu0 0.0
      %612 = vmatprep.subr.mxu0 0.0
      %613 = vmatpush1.msra.mxu0 0.0
      %614 = vmatprep.subr.mxu0 0.0
      %615 = vmatpush1.msra.mxu0 0.0
      %616 = vmatprep.subr.mxu0 0.0
      %617 = vmatpush1.msra.mxu0 0.0
      %618 = vmatprep.subr.mxu0 0.0
      %619 = vmatpush1.msra.mxu0 0.0
      %620 = vmatprep.subr.mxu0 0.0
      %621 = vmatpush1.msra.mxu0 0.0
      %622 = vmatprep.subr.mxu0 0.0
      %623 = vmatpush1.msra.mxu0 0.0
      %624 = vmatprep.subr.mxu0 0.0
      %625 = vmatpush1.msra.mxu0 0.0
      %626 = vmatprep.subr.mxu0 0.0
      %627 = vmatpush1.msra.mxu0 0.0
      %628 = vmatprep.subr.mxu0 0.0
      %629 = vmatpush1.msra.mxu0 0.0
      %630 = vmatprep.subr.mxu0 %v598
      %631 = vmatpush1.msra.mxu0 %v595
      %632 = vmatprep.subr.mxu0 0.0
      %633 = vmatpush2.msra.mxu0 0.0
      %634 = vmatprep.subr.mxu0 0.0
      %635 = vmatpush2.msra.mxu0 0.0
      %636 = vmatprep.subr.mxu0 0.0
      %637 = vmatpush2.msra.mxu0 0.0
      %638 = vmatprep.subr.mxu0 0.0
      %639 = vmatpush2.msra.mxu0 0.0
      %640 = vmatprep.subr.mxu0 0.0
      %641 = vmatpush2.msra.mxu0 0.0
      %642 = vmatprep.subr.mxu0 0.0
      %643 = vmatpush2.msra.mxu0 0.0
      %644 = vmatprep.subr.mxu0 0.0
      %645 = vmatpush2.msra.mxu0 0.0
      %646 = vmatprep.subr.mxu0 0.0
      %647 = vmatpush2.msra.mxu0 0.0
      %648 = vmatprep.subr.mxu0 0.0
      %649 = vmatpush2.msra.mxu0 0.0
      %650 = vmatprep.subr.mxu0 0.0
      %651 = vmatpush2.msra.mxu0 0.0
      %652 = vmatprep.subr.mxu0 0.0
      %653 = vmatpush2.msra.mxu0 0.0
      %654 = vmatprep.subr.mxu0 0.0
      %655 = vmatpush2.msra.mxu0 0.0
      %656 = vmatprep.subr.mxu0 0.0
      %657 = vmatpush2.msra.mxu0 0.0
      %658 = vmatprep.subr.mxu0 0.0
      %659 = vmatpush2.msra.mxu0 0.0
      %660 = vmatprep.subr.mxu0 0.0
      %661 = vmatpush2.msra.mxu0 0.0
      %662 = vmatprep.subr.mxu0 0.0
      %663 = vmatpush2.msra.mxu0 0.0
      %664 = vmatprep.mubr.f32.mxu0 0.0
      %665 = vmatmul.mubr.f32.gmra.mxu0 %v592
      %v666 = vpop.f32.mrf.mxu0
      %v667 = vadd.f32 0.0, %v666
      %v668 = vpop.f32.mrf.mxu0
      %v669 = vadd.f32 0.0, %v668
      %670 = vdwg.mxu0
      %v671 = vadd.f32 %v569, %v667
      %v672 = vadd.f32 %v570, %v669
      %v673 = vld [vmem:[#allocation2] sm:$0xff]
      %v674 = vld [vmem:[#allocation2 + $0x8] sm:$0xf]
      %s675 = scalar_lea.vmem %s3, 32
      %v676 = vld [vmem:[%s675] sm:$0xff]
      %v679 = vcombine.high %v673, %v673
      %680 = vrot.lane.b32.xlu0 %v673, 111
      %v681 = vpop.permute.xlu0 %680
      %682 = vrot.lane.b32.xlu0 %v679, 111
      %v683 = vpop.permute.xlu0 %682
      %684 = vrot.lane.b32.xlu0 %v674, 111
      %v685 = vpop.permute.xlu0 %684
      %vm686 = vcmask 908288
      %v687 = vsel %vm686, %v681, %v683
      %v688 = vsel %vm686, %v683, %v685
      %v690 = vsel %vm305, %v676, 0
      %v692 = vsel %vm309, %v687, 0
      %v694 = vsel %vm309, %v688, 0
      %696 = vmatprep.subr.mxu0 0.0
      %697 = vmatpush1.msra.mxu0 0.0
      %698 = vmatprep.subr.mxu0 0.0
      %699 = vmatpush1.msra.mxu0 0.0
      %700 = vmatprep.subr.mxu0 0.0
      %701 = vmatpush1.msra.mxu0 0.0
      %702 = vmatprep.subr.mxu0 0.0
      %703 = vmatpush1.msra.mxu0 0.0
      %704 = vmatprep.subr.mxu0 0.0
      %705 = vmatpush1.msra.mxu0 0.0
      %706 = vmatprep.subr.mxu0 0.0
      %707 = vmatpush1.msra.mxu0 0.0
      %708 = vmatprep.subr.mxu0 0.0
      %709 = vmatpush1.msra.mxu0 0.0
      %710 = vmatprep.subr.mxu0 0.0
      %711 = vmatpush1.msra.mxu0 0.0
      %712 = vmatprep.subr.mxu0 0.0
      %713 = vmatpush1.msra.mxu0 0.0
      %714 = vmatprep.subr.mxu0 0.0
      %715 = vmatpush1.msra.mxu0 0.0
      %716 = vmatprep.subr.mxu0 0.0
      %717 = vmatpush1.msra.mxu0 0.0
      %718 = vmatprep.subr.mxu0 0.0
      %719 = vmatpush1.msra.mxu0 0.0
      %720 = vmatprep.subr.mxu0 0.0
      %721 = vmatpush1.msra.mxu0 0.0
      %722 = vmatprep.subr.mxu0 0.0
      %723 = vmatpush1.msra.mxu0 0.0
      %724 = vmatprep.subr.mxu0 0.0
      %725 = vmatpush1.msra.mxu0 0.0
      %726 = vmatprep.subr.mxu0 %v694
      %727 = vmatpush1.msra.mxu0 %v692
      %728 = vmatprep.subr.mxu0 0.0
      %729 = vmatpush2.msra.mxu0 0.0
      %730 = vmatprep.subr.mxu0 0.0
      %731 = vmatpush2.msra.mxu0 0.0
      %732 = vmatprep.subr.mxu0 0.0
      %733 = vmatpush2.msra.mxu0 0.0
      %734 = vmatprep.subr.mxu0 0.0
      %735 = vmatpush2.msra.mxu0 0.0
      %736 = vmatprep.subr.mxu0 0.0
      %737 = vmatpush2.msra.mxu0 0.0
      %738 = vmatprep.subr.mxu0 0.0
      %739 = vmatpush2.msra.mxu0 0.0
      %740 = vmatprep.subr.mxu0 0.0
      %741 = vmatpush2.msra.mxu0 0.0
      %742 = vmatprep.subr.mxu0 0.0
      %743 = vmatpush2.msra.mxu0 0.0
      %744 = vmatprep.subr.mxu0 0.0
      %745 = vmatpush2.msra.mxu0 0.0
      %746 = vmatprep.subr.mxu0 0.0
      %747 = vmatpush2.msra.mxu0 0.0
      %748 = vmatprep.subr.mxu0 0.0
      %749 = vmatpush2.msra.mxu0 0.0
      %750 = vmatprep.subr.mxu0 0.0
      %751 = vmatpush2.msra.mxu0 0.0
      %752 = vmatprep.subr.mxu0 0.0
      %753 = vmatpush2.msra.mxu0 0.0
      %754 = vmatprep.subr.mxu0 0.0
      %755 = vmatpush2.msra.mxu0 0.0
      %756 = vmatprep.subr.mxu0 0.0
      %757 = vmatpush2.msra.mxu0 0.0
      %758 = vmatprep.subr.mxu0 0.0
      %759 = vmatpush2.msra.mxu0 0.0
      %760 = vmatprep.mubr.f32.mxu0 0.0
      %761 = vmatmul.mubr.f32.gmra.mxu0 %v690
      %v762 = vpop.f32.mrf.mxu0
      %v763 = vadd.f32 0.0, %v762
      %v764 = vpop.f32.mrf.mxu0
      %v765 = vadd.f32 0.0, %v764
      %766 = vdwg.mxu0
      %v767 = vadd.f32 %v671, %v763
      %v768 = vadd.f32 %v672, %v765
      %v769 = vld [vmem:[#allocation2] sm:$0xff]
      %v770 = vld [vmem:[#allocation2 + $0x8] sm:$0xf]
      %v773 = vcombine.high %v769, %v769
      %774 = vrot.lane.b32.xlu0 %v769, 110
      %v775 = vpop.permute.xlu0 %774
      %776 = vrot.lane.b32.xlu0 %v773, 110
      %v777 = vpop.permute.xlu0 %776
      %778 = vrot.lane.b32.xlu0 %v770, 110
      %v779 = vpop.permute.xlu0 %778
      %vm780 = vcmask 900096
      %v781 = vsel %vm780, %v775, %v777
      %v782 = vsel %vm780, %v777, %v779
      %v785 = vsel %vm469, %v781, 0.0
      %v786 = vsel %vm470, %v782, 0.0
      %s787 = scalar_lea.vmem %s3, 40
      %v788 = vld [vmem:[%s787] sm:$0xff]
      %v790 = vsel %vm305, %v788, 0
      %v793 = vsel %vm309, %v785, 0
      %v796 = vsel %vm309, %v786, 0
      %798 = vmatprep.subr.mxu0 0.0
      %799 = vmatpush1.msra.mxu0 0.0
      %800 = vmatprep.subr.mxu0 0.0
      %801 = vmatpush1.msra.mxu0 0.0
      %802 = vmatprep.subr.mxu0 0.0
      %803 = vmatpush1.msra.mxu0 0.0
      %804 = vmatprep.subr.mxu0 0.0
      %805 = vmatpush1.msra.mxu0 0.0
      %806 = vmatprep.subr.mxu0 0.0
      %807 = vmatpush1.msra.mxu0 0.0
      %808 = vmatprep.subr.mxu0 0.0
      %809 = vmatpush1.msra.mxu0 0.0
      %810 = vmatprep.subr.mxu0 0.0
      %811 = vmatpush1.msra.mxu0 0.0
      %812 = vmatprep.subr.mxu0 0.0
      %813 = vmatpush1.msra.mxu0 0.0
      %814 = vmatprep.subr.mxu0 0.0
      %815 = vmatpush1.msra.mxu0 0.0
      %816 = vmatprep.subr.mxu0 0.0
      %817 = vmatpush1.msra.mxu0 0.0
      %818 = vmatprep.subr.mxu0 0.0
      %819 = vmatpush1.msra.mxu0 0.0
      %820 = vmatprep.subr.mxu0 0.0
      %821 = vmatpush1.msra.mxu0 0.0
      %822 = vmatprep.subr.mxu0 0.0
      %823 = vmatpush1.msra.mxu0 0.0
      %824 = vmatprep.subr.mxu0 0.0
      %825 = vmatpush1.msra.mxu0 0.0
      %826 = vmatprep.subr.mxu0 0.0
      %827 = vmatpush1.msra.mxu0 0.0
      %828 = vmatprep.subr.mxu0 %v796
      %829 = vmatpush1.msra.mxu0 %v793
      %830 = vmatprep.subr.mxu0 0.0
      %831 = vmatpush2.msra.mxu0 0.0
      %832 = vmatprep.subr.mxu0 0.0
      %833 = vmatpush2.msra.mxu0 0.0
      %834 = vmatprep.subr.mxu0 0.0
      %835 = vmatpush2.msra.mxu0 0.0
      %836 = vmatprep.subr.mxu0 0.0
      %837 = vmatpush2.msra.mxu0 0.0
      %838 = vmatprep.subr.mxu0 0.0
      %839 = vmatpush2.msra.mxu0 0.0
      %840 = vmatprep.subr.mxu0 0.0
      %841 = vmatpush2.msra.mxu0 0.0
      %842 = vmatprep.subr.mxu0 0.0
      %843 = vmatpush2.msra.mxu0 0.0
      %844 = vmatprep.subr.mxu0 0.0
      %845 = vmatpush2.msra.mxu0 0.0
      %846 = vmatprep.subr.mxu0 0.0
      %847 = vmatpush2.msra.mxu0 0.0
      %848 = vmatprep.subr.mxu0 0.0
      %849 = vmatpush2.msra.mxu0 0.0
      %850 = vmatprep.subr.mxu0 0.0
      %851 = vmatpush2.msra.mxu0 0.0
      %852 = vmatprep.subr.mxu0 0.0
      %853 = vmatpush2.msra.mxu0 0.0
      %854 = vmatprep.subr.mxu0 0.0
      %855 = vmatpush2.msra.mxu0 0.0
      %856 = vmatprep.subr.mxu0 0.0
      %857 = vmatpush2.msra.mxu0 0.0
      %858 = vmatprep.subr.mxu0 0.0
      %859 = vmatpush2.msra.mxu0 0.0
      %860 = vmatprep.subr.mxu0 0.0
      %861 = vmatpush2.msra.mxu0 0.0
      %862 = vmatprep.mubr.f32.mxu0 0.0
      %863 = vmatmul.mubr.f32.gmra.mxu0 %v790
      %v864 = vpop.f32.mrf.mxu0
      %v865 = vadd.f32 0.0, %v864
      %v866 = vpop.f32.mrf.mxu0
      %v867 = vadd.f32 0.0, %v866
      %868 = vdwg.mxu0
      %v869 = vadd.f32 %v767, %v865
      %v870 = vadd.f32 %v768, %v867
      %v871 = vld [vmem:[#allocation2] sm:$0xff]
      %v872 = vld [vmem:[#allocation2 + $0x8] sm:$0xf]
      %v875 = vcombine.high %v871, %v871
      %876 = vrot.lane.b32.xlu0 %v871, 96
      %v877 = vpop.permute.xlu0 %876
      %878 = vrot.lane.b32.xlu0 %v875, 96
      %v879 = vpop.permute.xlu0 %878
      %880 = vrot.lane.b32.xlu0 %v872, 96
      %v881 = vpop.permute.xlu0 %880
      %vm882 = vcmask 785408
      %v883 = vsel %vm882, %v877, %v879
      %v884 = vsel %vm882, %v879, %v881
      %v887 = vsel %vm284, %v883, 0.0
      %v888 = vsel %vm285, %v884, 0.0
      %s889 = scalar_lea.vmem %s3, 48
      %v890 = vld [vmem:[%s889] sm:$0xff]
      %v892 = vsel %vm305, %v890, 0
      %v895 = vsel %vm309, %v887, 0
      %v898 = vsel %vm309, %v888, 0
      %900 = vmatprep.subr.mxu0 0.0
      %901 = vmatpush1.msra.mxu0 0.0
      %902 = vmatprep.subr.mxu0 0.0
      %903 = vmatpush1.msra.mxu0 0.0
      %904 = vmatprep.subr.mxu0 0.0
      %905 = vmatpush1.msra.mxu0 0.0
      %906 = vmatprep.subr.mxu0 0.0
      %907 = vmatpush1.msra.mxu0 0.0
      %908 = vmatprep.subr.mxu0 0.0
      %909 = vmatpush1.msra.mxu0 0.0
      %910 = vmatprep.subr.mxu0 0.0
      %911 = vmatpush1.msra.mxu0 0.0
      %912 = vmatprep.subr.mxu0 0.0
      %913 = vmatpush1.msra.mxu0 0.0
      %914 = vmatprep.subr.mxu0 0.0
      %915 = vmatpush1.msra.mxu0 0.0
      %916 = vmatprep.subr.mxu0 0.0
      %917 = vmatpush1.msra.mxu0 0.0
      %918 = vmatprep.subr.mxu0 0.0
      %919 = vmatpush1.msra.mxu0 0.0
      %920 = vmatprep.subr.mxu0 0.0
      %921 = vmatpush1.msra.mxu0 0.0
      %922 = vmatprep.subr.mxu0 0.0
      %923 = vmatpush1.msra.mxu0 0.0
      %924 = vmatprep.subr.mxu0 0.0
      %925 = vmatpush1.msra.mxu0 0.0
      %926 = vmatprep.subr.mxu0 0.0
      %927 = vmatpush1.msra.mxu0 0.0
      %928 = vmatprep.subr.mxu0 0.0
      %929 = vmatpush1.msra.mxu0 0.0
      %930 = vmatprep.subr.mxu0 %v898
      %931 = vmatpush1.msra.mxu0 %v895
      %932 = vmatprep.subr.mxu0 0.0
      %933 = vmatpush2.msra.mxu0 0.0
      %934 = vmatprep.subr.mxu0 0.0
      %935 = vmatpush2.msra.mxu0 0.0
      %936 = vmatprep.subr.mxu0 0.0
      %937 = vmatpush2.msra.mxu0 0.0
      %938 = vmatprep.subr.mxu0 0.0
      %939 = vmatpush2.msra.mxu0 0.0
      %940 = vmatprep.subr.mxu0 0.0
      %941 = vmatpush2.msra.mxu0 0.0
      %942 = vmatprep.subr.mxu0 0.0
      %943 = vmatpush2.msra.mxu0 0.0
      %944 = vmatprep.subr.mxu0 0.0
      %945 = vmatpush2.msra.mxu0 0.0
      %946 = vmatprep.subr.mxu0 0.0
      %947 = vmatpush2.msra.mxu0 0.0
      %948 = vmatprep.subr.mxu0 0.0
      %949 = vmatpush2.msra.mxu0 0.0
      %950 = vmatprep.subr.mxu0 0.0
      %951 = vmatpush2.msra.mxu0 0.0
      %952 = vmatprep.subr.mxu0 0.0
      %953 = vmatpush2.msra.mxu0 0.0
      %954 = vmatprep.subr.mxu0 0.0
      %955 = vmatpush2.msra.mxu0 0.0
      %956 = vmatprep.subr.mxu0 0.0
      %957 = vmatpush2.msra.mxu0 0.0
      %958 = vmatprep.subr.mxu0 0.0
      %959 = vmatpush2.msra.mxu0 0.0
      %960 = vmatprep.subr.mxu0 0.0
      %961 = vmatpush2.msra.mxu0 0.0
      %962 = vmatprep.subr.mxu0 0.0
      %963 = vmatpush2.msra.mxu0 0.0
      %964 = vmatprep.mubr.f32.mxu0 0.0
      %965 = vmatmul.mubr.f32.gmra.mxu0 %v892
      %v966 = vpop.f32.mrf.mxu0
      %v967 = vadd.f32 0.0, %v966
      %v968 = vpop.f32.mrf.mxu0
      %v969 = vadd.f32 0.0, %v968
      %970 = vdwg.mxu0
      %v971 = vadd.f32 %v869, %v967
      %v972 = vadd.f32 %v870, %v969
      %v973 = vld [vmem:[#allocation2] sm:$0xff]
      %v974 = vld [vmem:[#allocation2 + $0x8] sm:$0xf]
      %s975 = scalar_lea.vmem %s3, 56
      %v976 = vld [vmem:[%s975] sm:$0xff]
      %v979 = vcombine.high %v973, %v973
      %980 = vrot.lane.b32.xlu0 %v973, 95
      %v981 = vpop.permute.xlu0 %980
      %982 = vrot.lane.b32.xlu0 %v979, 95
      %v983 = vpop.permute.xlu0 %982
      %984 = vrot.lane.b32.xlu0 %v974, 95
      %v985 = vpop.permute.xlu0 %984
      %vm986 = vcmask 777216
      %v987 = vsel %vm986, %v981, %v983
      %v988 = vsel %vm986, %v983, %v985
      %v990 = vsel %vm305, %v976, 0
      %v992 = vsel %vm309, %v987, 0
      %v994 = vsel %vm309, %v988, 0
      %996 = vmatprep.subr.mxu0 0.0
      %997 = vmatpush1.msra.mxu0 0.0
      %998 = vmatprep.subr.mxu0 0.0
      %999 = vmatpush1.msra.mxu0 0.0
      %1000 = vmatprep.subr.mxu0 0.0
      %1001 = vmatpush1.msra.mxu0 0.0
      %1002 = vmatprep.subr.mxu0 0.0
      %1003 = vmatpush1.msra.mxu0 0.0
      %1004 = vmatprep.subr.mxu0 0.0
      %1005 = vmatpush1.msra.mxu0 0.0
      %1006 = vmatprep.subr.mxu0 0.0
      %1007 = vmatpush1.msra.mxu0 0.0
      %1008 = vmatprep.subr.mxu0 0.0
      %1009 = vmatpush1.msra.mxu0 0.0
      %1010 = vmatprep.subr.mxu0 0.0
      %1011 = vmatpush1.msra.mxu0 0.0
      %1012 = vmatprep.subr.mxu0 0.0
      %1013 = vmatpush1.msra.mxu0 0.0
      %1014 = vmatprep.subr.mxu0 0.0
      %1015 = vmatpush1.msra.mxu0 0.0
      %1016 = vmatprep.subr.mxu0 0.0
      %1017 = vmatpush1.msra.mxu0 0.0
      %1018 = vmatprep.subr.mxu0 0.0
      %1019 = vmatpush1.msra.mxu0 0.0
      %1020 = vmatprep.subr.mxu0 0.0
      %1021 = vmatpush1.msra.mxu0 0.0
      %1022 = vmatprep.subr.mxu0 0.0
      %1023 = vmatpush1.msra.mxu0 0.0
      %1024 = vmatprep.subr.mxu0 0.0
      %1025 = vmatpush1.msra.mxu0 0.0
      %1026 = vmatprep.subr.mxu0 %v994
      %1027 = vmatpush1.msra.mxu0 %v992
      %1028 = vmatprep.subr.mxu0 0.0
      %1029 = vmatpush2.msra.mxu0 0.0
      %1030 = vmatprep.subr.mxu0 0.0
      %1031 = vmatpush2.msra.mxu0 0.0
      %1032 = vmatprep.subr.mxu0 0.0
      %1033 = vmatpush2.msra.mxu0 0.0
      %1034 = vmatprep.subr.mxu0 0.0
      %1035 = vmatpush2.msra.mxu0 0.0
      %1036 = vmatprep.subr.mxu0 0.0
      %1037 = vmatpush2.msra.mxu0 0.0
      %1038 = vmatprep.subr.mxu0 0.0
      %1039 = vmatpush2.msra.mxu0 0.0
      %1040 = vmatprep.subr.mxu0 0.0
      %1041 = vmatpush2.msra.mxu0 0.0
      %1042 = vmatprep.subr.mxu0 0.0
      %1043 = vmatpush2.msra.mxu0 0.0
      %1044 = vmatprep.subr.mxu0 0.0
      %1045 = vmatpush2.msra.mxu0 0.0
      %1046 = vmatprep.subr.mxu0 0.0
      %1047 = vmatpush2.msra.mxu0 0.0
      %1048 = vmatprep.subr.mxu0 0.0
      %1049 = vmatpush2.msra.mxu0 0.0
      %1050 = vmatprep.subr.mxu0 0.0
      %1051 = vmatpush2.msra.mxu0 0.0
      %1052 = vmatprep.subr.mxu0 0.0
      %1053 = vmatpush2.msra.mxu0 0.0
      %1054 = vmatprep.subr.mxu0 0.0
      %1055 = vmatpush2.msra.mxu0 0.0
      %1056 = vmatprep.subr.mxu0 0.0
      %1057 = vmatpush2.msra.mxu0 0.0
      %1058 = vmatprep.subr.mxu0 0.0
      %1059 = vmatpush2.msra.mxu0 0.0
      %1060 = vmatprep.mubr.f32.mxu0 0.0
      %1061 = vmatmul.mubr.f32.gmra.mxu0 %v990
      %v1062 = vpop.f32.mrf.mxu0
      %v1063 = vadd.f32 0.0, %v1062
      %v1064 = vpop.f32.mrf.mxu0
      %v1065 = vadd.f32 0.0, %v1064
      %1066 = vdwg.mxu0
      %v1067 = vadd.f32 %v971, %v1063
      %v1068 = vadd.f32 %v972, %v1065
      %v1069 = vld [vmem:[#allocation2] sm:$0xff]
      %v1070 = vld [vmem:[#allocation2 + $0x8] sm:$0xf]
      %v1073 = vcombine.high %v1069, %v1069
      %1074 = vrot.lane.b32.xlu0 %v1069, 94
      %v1075 = vpop.permute.xlu0 %1074
      %1076 = vrot.lane.b32.xlu0 %v1073, 94
      %v1077 = vpop.permute.xlu0 %1076
      %1078 = vrot.lane.b32.xlu0 %v1070, 94
      %v1079 = vpop.permute.xlu0 %1078
      %vm1080 = vcmask 769024
      %v1081 = vsel %vm1080, %v1075, %v1077
      %v1082 = vsel %vm1080, %v1077, %v1079
      %v1085 = vsel %vm469, %v1081, 0.0
      %v1086 = vsel %vm470, %v1082, 0.0
      %s1087 = scalar_lea.vmem %s3, 64
      %v1088 = vld [vmem:[%s1087] sm:$0xff]
      %v1090 = vsel %vm305, %v1088, 0
      %v1093 = vsel %vm309, %v1085, 0
      %v1096 = vsel %vm309, %v1086, 0
      %1098 = vmatprep.subr.mxu0 0.0
      %1099 = vmatpush1.msra.mxu0 0.0
      %1100 = vmatprep.subr.mxu0 0.0
      %1101 = vmatpush1.msra.mxu0 0.0
      %1102 = vmatprep.subr.mxu0 0.0
      %1103 = vmatpush1.msra.mxu0 0.0
      %1104 = vmatprep.subr.mxu0 0.0
      %1105 = vmatpush1.msra.mxu0 0.0
      %1106 = vmatprep.subr.mxu0 0.0
      %1107 = vmatpush1.msra.mxu0 0.0
      %1108 = vmatprep.subr.mxu0 0.0
      %1109 = vmatpush1.msra.mxu0 0.0
      %1110 = vmatprep.subr.mxu0 0.0
      %1111 = vmatpush1.msra.mxu0 0.0
      %1112 = vmatprep.subr.mxu0 0.0
      %1113 = vmatpush1.msra.mxu0 0.0
      %1114 = vmatprep.subr.mxu0 0.0
      %1115 = vmatpush1.msra.mxu0 0.0
      %1116 = vmatprep.subr.mxu0 0.0
      %1117 = vmatpush1.msra.mxu0 0.0
      %1118 = vmatprep.subr.mxu0 0.0
      %1119 = vmatpush1.msra.mxu0 0.0
      %1120 = vmatprep.subr.mxu0 0.0
      %1121 = vmatpush1.msra.mxu0 0.0
      %1122 = vmatprep.subr.mxu0 0.0
      %1123 = vmatpush1.msra.mxu0 0.0
      %1124 = vmatprep.subr.mxu0 0.0
      %1125 = vmatpush1.msra.mxu0 0.0
      %1126 = vmatprep.subr.mxu0 0.0
      %1127 = vmatpush1.msra.mxu0 0.0
      %1128 = vmatprep.subr.mxu0 %v1096
      %1129 = vmatpush1.msra.mxu0 %v1093
      %1130 = vmatprep.subr.mxu0 0.0
      %1131 = vmatpush2.msra.mxu0 0.0
      %1132 = vmatprep.subr.mxu0 0.0
      %1133 = vmatpush2.msra.mxu0 0.0
      %1134 = vmatprep.subr.mxu0 0.0
      %1135 = vmatpush2.msra.mxu0 0.0
      %1136 = vmatprep.subr.mxu0 0.0
      %1137 = vmatpush2.msra.mxu0 0.0
      %1138 = vmatprep.subr.mxu0 0.0
      %1139 = vmatpush2.msra.mxu0 0.0
      %1140 = vmatprep.subr.mxu0 0.0
      %1141 = vmatpush2.msra.mxu0 0.0
      %1142 = vmatprep.subr.mxu0 0.0
      %1143 = vmatpush2.msra.mxu0 0.0
      %1144 = vmatprep.subr.mxu0 0.0
      %1145 = vmatpush2.msra.mxu0 0.0
      %1146 = vmatprep.subr.mxu0 0.0
      %1147 = vmatpush2.msra.mxu0 0.0
      %1148 = vmatprep.subr.mxu0 0.0
      %1149 = vmatpush2.msra.mxu0 0.0
      %1150 = vmatprep.subr.mxu0 0.0
      %1151 = vmatpush2.msra.mxu0 0.0
      %1152 = vmatprep.subr.mxu0 0.0
      %1153 = vmatpush2.msra.mxu0 0.0
      %1154 = vmatprep.subr.mxu0 0.0
      %1155 = vmatpush2.msra.mxu0 0.0
      %1156 = vmatprep.subr.mxu0 0.0
      %1157 = vmatpush2.msra.mxu0 0.0
      %1158 = vmatprep.subr.mxu0 0.0
      %1159 = vmatpush2.msra.mxu0 0.0
      %1160 = vmatprep.subr.mxu0 0.0
      %1161 = vmatpush2.msra.mxu0 0.0
      %1162 = vmatprep.mubr.f32.mxu0 0.0
      %1163 = vmatmul.mubr.f32.gmra.mxu0 %v1090
      %v1164 = vpop.f32.mrf.mxu0
      %v1165 = vadd.f32 0.0, %v1164
      %v1166 = vpop.f32.mrf.mxu0
      %v1167 = vadd.f32 0.0, %v1166
      %1168 = vdwg.mxu0
      %v1169 = vadd.f32 %v1067, %v1165
      %v1170 = vadd.f32 %v1068, %v1167
      %v1173 = vrot.slane %v1169, 4
      %v1174 = vrot.slane %v1170, 4
      %1177 = vst [vmem:[%s197] sm:$0xf0] %v1173
      %1178 = vst [vmem:[%s197 + $0x8] sm:$0xf0] %v1174
      %1179 = vst [vmem:[%s197 + $0x10] sm:$0xf] %v1173
      %1180 = vst [vmem:[%s197 + $0x18] sm:$0xf] %v1174
      %p1181 = scmp.lt.s32.totalorder %s15, 1
      %s1182 = scalar_select %p1181, %s15, 1
      %s1183 = smul.addr %s1182, 4
      %s1184 = smul.addr %s1183, 8
      %s1185 = scalar_lea.vmem %s4, %s1184
      // Predicated region
      $region37: #{tpu_custom_call.1} parent=35 // pred_check
        %p1186 = pneg %p122
      $region38: #{tpu_custom_call.1} parent=35 // pred_check_branch
        %1188 = sbr.rel (%p1186) target = $region40
      $region39: #{tpu_custom_call.1} parent=35 // pred_region
        _
      $region40: #{tpu_custom_call.1} parent=35 // pred_fallthru
        _
    $region36: #{tpu_custom_call.1} parent=5 // pred_fallthru
      _
    %p1189 = scmp.le.s32.totalorder 2, %s10
    // Predicated region
    $region41: #{tpu_custom_call.1} parent=5 // pred_check
      %p1190 = pneg %p1189
    $region42: #{tpu_custom_call.1} parent=5 // pred_check_branch
      %1192 = sbr.rel (%p1190) target = $region44
    $region43: #{tpu_custom_call.1} parent=5 // pred_region
      %s1193 = ssub.s32 %s10, 2
      // Predicated region
      $region45: #{tpu_custom_call.1} parent=43 // pred_check
        %p1194 = pneg %p128
      $region46: #{tpu_custom_call.1} parent=43 // pred_check_branch
        %1196 = sbr.rel (%p1194) target = $region48
      $region47: #{tpu_custom_call.1} parent=43 // pred_region
        %p1197 = scmp.lt.s32.totalorder %s16, 1
        %s1198 = scalar_select %p1197, %s16, 1
        %s1199 = smul.addr %s1198, 4
        %s1200 = smul.addr %s1199, 8
        %s1201 = scalar_lea.vmem %s4, %s1200
      $region48: #{tpu_custom_call.1} parent=43 // pred_fallthru
        _
    $region44: #{tpu_custom_call.1} parent=5 // pred_fallthru
      _
  $region6: #{tpu_custom_call.1} parent=0 // loop_footer
    %s14 = sadd.s32 1, %s10
  $region7: #{tpu_custom_call.1} parent=0 // loop_footer_branch
    %9 = sbr.rel target = $region3
  $region8: #{tpu_custom_call.1} parent=0 // loop_exit
    _

</llo_original>
